<compile_context>
chip_gen: v5e
topology: v5e:2x2
jax: 0.10.0
libtpu: 0.0.40
codegen_flags: <defaults>
</compile_context>

<pallas_src>
import functools
import math

import jax
import jax.numpy as jnp
from jax import lax
from jax.experimental import pallas as pl
from jax.experimental.pallas import tpu as pltpu


_GOLDEN = 0x9E3779B9  # 32-bit golden-ratio constant for seed mixing
_TENSOR_SALTS = (0x85EBCA6B, 0xC2B2AE35, 0x27D4EB2F, 0x165667B1)


def _dropout22_kernel(seed_ref, x0_ref, x1_ref, x2_ref, x3_ref,
                      o0_ref, o1_ref, o2_ref, o3_ref, *,
                      threshold24, scale, tile_rows):
    shape = x0_ref.shape                              # (TM, 128)
    # Global element index of every lane in this tile (hoisted; shared by all
    # four tensors).
    rows = lax.broadcasted_iota(jnp.int32, shape, 0)
    lanes = lax.broadcasted_iota(jnp.int32, shape, 1)
    base = pl.program_id(0) * (tile_rows * 128)
    counter = (base + rows * 128 + lanes).astype(jnp.uint32)

    seed_mix = seed_ref[0].astype(jnp.uint32) * jnp.uint32(_GOLDEN)
    thresh = jnp.int32(threshold24)
    scale_c = jnp.asarray(scale, dtype=x0_ref.dtype)  # native-dtype math
    zero_c = jnp.asarray(0, dtype=x0_ref.dtype)

    def drop_one(x_ref, o_ref, salt):
        x = x_ref[...]
        # Counter-based hash PRNG (murmur3 fmix32): portable + pure VALU.
        h = counter ^ (seed_mix + jnp.uint32(salt))
        h = h ^ (h >> 16)
        h = h * jnp.uint32(0x7FEB352D)
        h = h ^ (h >> 15)
        h = h * jnp.uint32(0x846CA68B)
        h = h ^ (h >> 16)
        # Integer-threshold keep test on the top 24 bits:
        # P(drop) = threshold24 / 2^24 = p, survivors scaled by 1/(1-p).
        r24 = (h >> 8).astype(jnp.int32)
        keep = r24 >= thresh
        o_ref[...] = jnp.where(keep, x * scale_c, zero_c)

    drop_one(x0_ref, o0_ref, _TENSOR_SALTS[0])
    drop_one(x1_ref, o1_ref, _TENSOR_SALTS[1])
    drop_one(x2_ref, o2_ref, _TENSOR_SALTS[2])
    drop_one(x3_ref, o3_ref, _TENSOR_SALTS[3])


def dropout22_pallas(xs, p=0.5, seed=0, training=True):
    """xs: tuple/list of 4 equally-shaped arrays -> 4 dropped-out arrays."""
    x0, x1, x2, x3 = xs
    assert x0.shape == x1.shape == x2.shape == x3.shape
    assert x0.dtype == x1.dtype == x2.dtype == x3.dtype
    # TODO(synk): the PyTorch `inplace` flag has no meaning in functional JAX.
    if (not training) or p == 0.0:
        return (x0, x1, x2, x3)
    if p >= 1.0:
        return tuple(jnp.zeros_like(x) for x in (x0, x1, x2, x3))

    orig_shape = x0.shape
    dtype = x0.dtype
    total = math.prod(orig_shape)
    itemsize = jnp.dtype(dtype).itemsize

    # Lane-dense layout: flatten + pad to a multiple of (8 sublanes x 128
    # lanes) so every load/store is full-width and the row count is a
    # multiple of 8.  The pad/copy is skipped when already aligned.
    N = 128
    padded = pl.cdiv(total, 8 * N) * (8 * N)
    pad = padded - total
    M = padded // N

    def to2d(x):
        flat = x.reshape(-1)
        if pad:
            flat = jnp.pad(flat, (0, pad))
        return flat.reshape(M, N)

    # Row tile: ~1 MiB per block per tensor (8 live blocks double-buffered
    # ~16 MiB) -> TM = 2048 for f32, 4096 for bf16.  Never take a huge array
    # as a single block; Pallas masks the ragged last tile.
    tm_cap = max(8, ((1 << 20) // (N * itemsize)) // 8 * 8)
    TM = min(tm_cap, M)
    num_tiles = pl.cdiv(M, TM)

    threshold24 = int(round(float(p) * (1 << 24)))
    scale = 1.0 / (1.0 - float(p))

    kernel = functools.partial(_dropout22_kernel, threshold24=threshold24,
                               scale=scale, tile_rows=TM)
    seed_arr = jnp.asarray([seed], dtype=jnp.int32)

    block = pl.BlockSpec((TM, N), lambda i, seed: (i, 0))
    grid_spec = pltpu.PrefetchScalarGridSpec(
        num_scalar_prefetch=1,
        grid=(num_tiles,),
        in_specs=[block, block, block, block],
        out_specs=[block, block, block, block],
    )

    cost = pl.CostEstimate(
        flops=12 * 4 * padded,                      # ~hash + select per element
        transcendentals=0,
        bytes_accessed=2 * 4 * padded * itemsize,   # read + write, 4 tensors
    )

    outs = pl.pallas_call(
        kernel,
        out_shape=tuple(jax.ShapeDtypeStruct((M, N), dtype) for _ in range(4)),
        grid_spec=grid_spec,
        compiler_params=pltpu.CompilerParams(
            dimension_semantics=("parallel",),
            vmem_limit_bytes=32 * 1024 * 1024),
        cost_estimate=cost,
    )(seed_arr, to2d(x0), to2d(x1), to2d(x2), to2d(x3))

    def back(o):
        flat = o.reshape(-1)
        if pad:
            flat = flat[:total]
        return flat.reshape(orig_shape)

    return tuple(back(o) for o in outs)


if __name__ == "__main__":
    # Small shapes consistent with the module's use in d2_resmlp:
    # four (B, seq, hidden) activation tensors.
    B, S, H = 2, 8, 32
    p = 0.5

    key = jax.random.PRNGKey(0)
    keys = jax.random.split(key, 4)
    xs = tuple(jax.random.normal(k, (B, S, H), dtype=jnp.float32) for k in keys)

    outs = dropout22_pallas(xs, p=p, seed=1234, training=True)
    outs = jax.block_until_ready(outs)

    keep_prob = 1.0 - p
    for x, o in zip(xs, outs):
        assert o.shape == x.shape and o.dtype == x.dtype
        zero_mask = (o == 0.0)
        # Surviving elements must equal x / (1 - p) (up to fp rounding).
        recon = jnp.where(zero_mask, x, o * keep_prob)
        assert jnp.allclose(recon, x, atol=1e-5, rtol=1e-5), "kept values wrong"
        # Dropped fraction statistically near p (512 elems -> very loose bound).
        frac = float(jnp.mean(zero_mask.astype(jnp.float32)))
        assert 0.25 < frac < 0.75, f"drop fraction {frac} far from p={p}"

    # The four masks must be drawn independently (not identical streams).
    assert bool(jnp.any((outs[0] == 0.0) != (outs[1] == 0.0)))

    # Different seeds give different masks (no per-layer stream reuse).
    outs_b = dropout22_pallas(xs, p=p, seed=1235, training=True)
    outs_b = jax.block_until_ready(outs_b)
    assert bool(jnp.any((outs[0] == 0.0) != (outs_b[0] == 0.0)))

    # Eval mode / p=0 is the identity (PyTorch semantics).
    outs_eval = dropout22_pallas(xs, p=p, seed=1234, training=False)
    for x, o in zip(xs, outs_eval):
        assert jnp.array_equal(o, x)

    print("KERNEL_OK")
</pallas_src>

<mosaic_0001>
module attributes {stable_mosaic.version = 11 : i64} {
  func.func @_dropout22_kernel(%arg0: i32, %arg1: memref<1xi32, #tpu.memory_space<smem>>, %arg2: memref<8x128xf32, #tpu.memory_space<vmem>>, %arg3: memref<8x128xf32, #tpu.memory_space<vmem>>, %arg4: memref<8x128xf32, #tpu.memory_space<vmem>>, %arg5: memref<8x128xf32, #tpu.memory_space<vmem>>, %arg6: memref<8x128xf32, #tpu.memory_space<vmem>>, %arg7: memref<8x128xf32, #tpu.memory_space<vmem>>, %arg8: memref<8x128xf32, #tpu.memory_space<vmem>>, %arg9: memref<8x128xf32, #tpu.memory_space<vmem>>) attributes {dimension_semantics = [#tpu.dimension_semantics<parallel>], iteration_bounds = array<i64: 1>, scalar_prefetch = 1 : i64, scratch_operands = 0 : i64, tpu.core_type = #tpu.core_type<tc>, window_params = [{transform_indices = @transform_0, window_bounds = array<i64: 8, 128>}, {transform_indices = @transform_1, window_bounds = array<i64: 8, 128>}, {transform_indices = @transform_2, window_bounds = array<i64: 8, 128>}, {transform_indices = @transform_3, window_bounds = array<i64: 8, 128>}, {transform_indices = @transform_4, window_bounds = array<i64: 8, 128>}, {transform_indices = @transform_5, window_bounds = array<i64: 8, 128>}, {transform_indices = @transform_6, window_bounds = array<i64: 8, 128>}, {transform_indices = @transform_7, window_bounds = array<i64: 8, 128>}]} {
    %0 = tpu.iota {dimensions = array<i32: 0>} : vector<8x128xi32>
    %1 = tpu.iota {dimensions = array<i32: 1>} : vector<8x128xi32>
    %c1024_i32 = arith.constant 1024 : i32
    %2 = arith.muli %arg0, %c1024_i32 : i32
    %c128_i32 = arith.constant 128 : i32
    %3 = vector.broadcast %c128_i32 : i32 to vector<8x128xi32>
    %4 = arith.muli %0, %3 : vector<8x128xi32>
    %5 = vector.broadcast %2 : i32 to vector<8x128xi32>
    %6 = arith.addi %5, %4 : vector<8x128xi32>
    %7 = arith.addi %6, %1 : vector<8x128xi32>
    %c0 = arith.constant 0 : index
    %8 = memref.load %arg1[%c0] : memref<1xi32, #tpu.memory_space<smem>>
    %c-1640531527_i32 = arith.constant -1640531527 : i32
    %9 = arith.muli %8, %c-1640531527_i32 : i32
    %c0_0 = arith.constant 0 : index
    %c0_1 = arith.constant 0 : index
    %10 = vector.load %arg2[%c0_0, %c0_1] : memref<8x128xf32, #tpu.memory_space<vmem>>, vector<8x128xf32>
    %c-2048144789_i32 = arith.constant -2048144789 : i32
    %11 = arith.addi %9, %c-2048144789_i32 : i32
    %12 = vector.broadcast %11 : i32 to vector<8x128xi32>
    %13 = arith.xori %7, %12 : vector<8x128xi32>
    %c16_i32 = arith.constant 16 : i32
    %14 = vector.broadcast %c16_i32 : i32 to vector<8x128xi32>
    %15 = arith.shrui %13, %14 : vector<8x128xi32>
    %16 = arith.xori %13, %15 : vector<8x128xi32>
    %c2146121005_i32 = arith.constant 2146121005 : i32
    %17 = vector.broadcast %c2146121005_i32 : i32 to vector<8x128xi32>
    %18 = arith.muli %16, %17 : vector<8x128xi32>
    %c15_i32 = arith.constant 15 : i32
    %19 = vector.broadcast %c15_i32 : i32 to vector<8x128xi32>
    %20 = arith.shrui %18, %19 : vector<8x128xi32>
    %21 = arith.xori %18, %20 : vector<8x128xi32>
    %c-2073254261_i32 = arith.constant -2073254261 : i32
    %22 = vector.broadcast %c-2073254261_i32 : i32 to vector<8x128xi32>
    %23 = arith.muli %21, %22 : vector<8x128xi32>
    %c16_i32_2 = arith.constant 16 : i32
    %24 = vector.broadcast %c16_i32_2 : i32 to vector<8x128xi32>
    %25 = arith.shrui %23, %24 : vector<8x128xi32>
    %26 = arith.xori %23, %25 : vector<8x128xi32>
    %c8_i32 = arith.constant 8 : i32
    %27 = vector.broadcast %c8_i32 : i32 to vector<8x128xi32>
    %28 = arith.shrui %26, %27 : vector<8x128xi32>
    %c8388608_i32 = arith.constant 8388608 : i32
    %29 = vector.broadcast %c8388608_i32 : i32 to vector<8x128xi32>
    %30 = arith.cmpi sge, %28, %29 : vector<8x128xi32>
    %cst = arith.constant 2.000000e+00 : f32
    %31 = vector.broadcast %cst : f32 to vector<8x128xf32>
    %32 = arith.mulf %10, %31 : vector<8x128xf32>
    %cst_3 = arith.constant 0.000000e+00 : f32
    %33 = vector.broadcast %cst_3 : f32 to vector<8x128xf32>
    %34 = arith.select %30, %32, %33 : vector<8x128xi1>, vector<8x128xf32>
    %c0_4 = arith.constant 0 : index
    %c0_5 = arith.constant 0 : index
    %35 = vector.load %arg6[%c0_4, %c0_5] : memref<8x128xf32, #tpu.memory_space<vmem>>, vector<8x128xf32>
    tpu.vector_store %arg6[%c0_4, %c0_5], %34 {strides = array<i32>} : memref<8x128xf32, #tpu.memory_space<vmem>>, vector<8x128xf32>,
    %c0_6 = arith.constant 0 : index
    %c0_7 = arith.constant 0 : index
    %36 = vector.load %arg3[%c0_6, %c0_7] : memref<8x128xf32, #tpu.memory_space<vmem>>, vector<8x128xf32>
    %c-1028477387_i32 = arith.constant -1028477387 : i32
    %37 = arith.addi %9, %c-1028477387_i32 : i32
    %38 = vector.broadcast %37 : i32 to vector<8x128xi32>
    %39 = arith.xori %7, %38 : vector<8x128xi32>
    %c16_i32_8 = arith.constant 16 : i32
    %40 = vector.broadcast %c16_i32_8 : i32 to vector<8x128xi32>
    %41 = arith.shrui %39, %40 : vector<8x128xi32>
    %42 = arith.xori %39, %41 : vector<8x128xi32>
    %c2146121005_i32_9 = arith.constant 2146121005 : i32
    %43 = vector.broadcast %c2146121005_i32_9 : i32 to vector<8x128xi32>
    %44 = arith.muli %42, %43 : vector<8x128xi32>
    %c15_i32_10 = arith.constant 15 : i32
    %45 = vector.broadcast %c15_i32_10 : i32 to vector<8x128xi32>
    %46 = arith.shrui %44, %45 : vector<8x128xi32>
    %47 = arith.xori %44, %46 : vector<8x128xi32>
    %c-2073254261_i32_11 = arith.constant -2073254261 : i32
    %48 = vector.broadcast %c-2073254261_i32_11 : i32 to vector<8x128xi32>
    %49 = arith.muli %47, %48 : vector<8x128xi32>
    %c16_i32_12 = arith.constant 16 : i32
    %50 = vector.broadcast %c16_i32_12 : i32 to vector<8x128xi32>
    %51 = arith.shrui %49, %50 : vector<8x128xi32>
    %52 = arith.xori %49, %51 : vector<8x128xi32>
    %c8_i32_13 = arith.constant 8 : i32
    %53 = vector.broadcast %c8_i32_13 : i32 to vector<8x128xi32>
    %54 = arith.shrui %52, %53 : vector<8x128xi32>
    %c8388608_i32_14 = arith.constant 8388608 : i32
    %55 = vector.broadcast %c8388608_i32_14 : i32 to vector<8x128xi32>
    %56 = arith.cmpi sge, %54, %55 : vector<8x128xi32>
    %cst_15 = arith.constant 2.000000e+00 : f32
    %57 = vector.broadcast %cst_15 : f32 to vector<8x128xf32>
    %58 = arith.mulf %36, %57 : vector<8x128xf32>
    %cst_16 = arith.constant 0.000000e+00 : f32
    %59 = vector.broadcast %cst_16 : f32 to vector<8x128xf32>
    %60 = arith.select %56, %58, %59 : vector<8x128xi1>, vector<8x128xf32>
    %c0_17 = arith.constant 0 : index
    %c0_18 = arith.constant 0 : index
    %61 = vector.load %arg7[%c0_17, %c0_18] : memref<8x128xf32, #tpu.memory_space<vmem>>, vector<8x128xf32>
    tpu.vector_store %arg7[%c0_17, %c0_18], %60 {strides = array<i32>} : memref<8x128xf32, #tpu.memory_space<vmem>>, vector<8x128xf32>,
    %c0_19 = arith.constant 0 : index
    %c0_20 = arith.constant 0 : index
    %62 = vector.load %arg4[%c0_19, %c0_20] : memref<8x128xf32, #tpu.memory_space<vmem>>, vector<8x128xf32>
    %c668265263_i32 = arith.constant 668265263 : i32
    %63 = arith.addi %9, %c668265263_i32 : i32
    %64 = vector.broadcast %63 : i32 to vector<8x128xi32>
    %65 = arith.xori %7, %64 : vector<8x128xi32>
    %c16_i32_21 = arith.constant 16 : i32
    %66 = vector.broadcast %c16_i32_21 : i32 to vector<8x128xi32>
    %67 = arith.shrui %65, %66 : vector<8x128xi32>
    %68 = arith.xori %65, %67 : vector<8x128xi32>
    %c2146121005_i32_22 = arith.constant 2146121005 : i32
    %69 = vector.broadcast %c2146121005_i32_22 : i32 to vector<8x128xi32>
    %70 = arith.muli %68, %69 : vector<8x128xi32>
    %c15_i32_23 = arith.constant 15 : i32
    %71 = vector.broadcast %c15_i32_23 : i32 to vector<8x128xi32>
    %72 = arith.shrui %70, %71 : vector<8x128xi32>
    %73 = arith.xori %70, %72 : vector<8x128xi32>
    %c-2073254261_i32_24 = arith.constant -2073254261 : i32
    %74 = vector.broadcast %c-2073254261_i32_24 : i32 to vector<8x128xi32>
    %75 = arith.muli %73, %74 : vector<8x128xi32>
    %c16_i32_25 = arith.constant 16 : i32
    %76 = vector.broadcast %c16_i32_25 : i32 to vector<8x128xi32>
    %77 = arith.shrui %75, %76 : vector<8x128xi32>
    %78 = arith.xori %75, %77 : vector<8x128xi32>
    %c8_i32_26 = arith.constant 8 : i32
    %79 = vector.broadcast %c8_i32_26 : i32 to vector<8x128xi32>
    %80 = arith.shrui %78, %79 : vector<8x128xi32>
    %c8388608_i32_27 = arith.constant 8388608 : i32
    %81 = vector.broadcast %c8388608_i32_27 : i32 to vector<8x128xi32>
    %82 = arith.cmpi sge, %80, %81 : vector<8x128xi32>
    %cst_28 = arith.constant 2.000000e+00 : f32
    %83 = vector.broadcast %cst_28 : f32 to vector<8x128xf32>
    %84 = arith.mulf %62, %83 : vector<8x128xf32>
    %cst_29 = arith.constant 0.000000e+00 : f32
    %85 = vector.broadcast %cst_29 : f32 to vector<8x128xf32>
    %86 = arith.select %82, %84, %85 : vector<8x128xi1>, vector<8x128xf32>
    %c0_30 = arith.constant 0 : index
    %c0_31 = arith.constant 0 : index
    %87 = vector.load %arg8[%c0_30, %c0_31] : memref<8x128xf32, #tpu.memory_space<vmem>>, vector<8x128xf32>
    tpu.vector_store %arg8[%c0_30, %c0_31], %86 {strides = array<i32>} : memref<8x128xf32, #tpu.memory_space<vmem>>, vector<8x128xf32>,
    %c0_32 = arith.constant 0 : index
    %c0_33 = arith.constant 0 : index
    %88 = vector.load %arg5[%c0_32, %c0_33] : memref<8x128xf32, #tpu.memory_space<vmem>>, vector<8x128xf32>
    %c374761393_i32 = arith.constant 374761393 : i32
    %89 = arith.addi %9, %c374761393_i32 : i32
    %90 = vector.broadcast %89 : i32 to vector<8x128xi32>
    %91 = arith.xori %7, %90 : vector<8x128xi32>
    %c16_i32_34 = arith.constant 16 : i32
    %92 = vector.broadcast %c16_i32_34 : i32 to vector<8x128xi32>
    %93 = arith.shrui %91, %92 : vector<8x128xi32>
    %94 = arith.xori %91, %93 : vector<8x128xi32>
    %c2146121005_i32_35 = arith.constant 2146121005 : i32
    %95 = vector.broadcast %c2146121005_i32_35 : i32 to vector<8x128xi32>
    %96 = arith.muli %94, %95 : vector<8x128xi32>
    %c15_i32_36 = arith.constant 15 : i32
    %97 = vector.broadcast %c15_i32_36 : i32 to vector<8x128xi32>
    %98 = arith.shrui %96, %97 : vector<8x128xi32>
    %99 = arith.xori %96, %98 : vector<8x128xi32>
    %c-2073254261_i32_37 = arith.constant -2073254261 : i32
    %100 = vector.broadcast %c-2073254261_i32_37 : i32 to vector<8x128xi32>
    %101 = arith.muli %99, %100 : vector<8x128xi32>
    %c16_i32_38 = arith.constant 16 : i32
    %102 = vector.broadcast %c16_i32_38 : i32 to vector<8x128xi32>
    %103 = arith.shrui %101, %102 : vector<8x128xi32>
    %104 = arith.xori %101, %103 : vector<8x128xi32>
    %c8_i32_39 = arith.constant 8 : i32
    %105 = vector.broadcast %c8_i32_39 : i32 to vector<8x128xi32>
    %106 = arith.shrui %104, %105 : vector<8x128xi32>
    %c8388608_i32_40 = arith.constant 8388608 : i32
    %107 = vector.broadcast %c8388608_i32_40 : i32 to vector<8x128xi32>
    %108 = arith.cmpi sge, %106, %107 : vector<8x128xi32>
    %cst_41 = arith.constant 2.000000e+00 : f32
    %109 = vector.broadcast %cst_41 : f32 to vector<8x128xf32>
    %110 = arith.mulf %88, %109 : vector<8x128xf32>
    %cst_42 = arith.constant 0.000000e+00 : f32
    %111 = vector.broadcast %cst_42 : f32 to vector<8x128xf32>
    %112 = arith.select %108, %110, %111 : vector<8x128xi1>, vector<8x128xf32>
    %c0_43 = arith.constant 0 : index
    %c0_44 = arith.constant 0 : index
    %113 = vector.load %arg9[%c0_43, %c0_44] : memref<8x128xf32, #tpu.memory_space<vmem>>, vector<8x128xf32>
    tpu.vector_store %arg9[%c0_43, %c0_44], %112 {strides = array<i32>} : memref<8x128xf32, #tpu.memory_space<vmem>>, vector<8x128xf32>,
    return
  }
  func.func @transform_0(%arg0: i32, %arg1: memref<1xi32, #tpu.memory_space<smem>>) -> (i32, i32) {
    %c0_i32 = arith.constant 0 : i32
    %c0_i32_0 = arith.constant 0 : i32
    return %arg0, %c0_i32 : i32, i32
  }
  func.func @transform_1(%arg0: i32, %arg1: memref<1xi32, #tpu.memory_space<smem>>) -> (i32, i32) {
    %c0_i32 = arith.constant 0 : i32
    %c0_i32_0 = arith.constant 0 : i32
    return %arg0, %c0_i32 : i32, i32
  }
  func.func @transform_2(%arg0: i32, %arg1: memref<1xi32, #tpu.memory_space<smem>>) -> (i32, i32) {
    %c0_i32 = arith.constant 0 : i32
    %c0_i32_0 = arith.constant 0 : i32
    return %arg0, %c0_i32 : i32, i32
  }
  func.func @transform_3(%arg0: i32, %arg1: memref<1xi32, #tpu.memory_space<smem>>) -> (i32, i32) {
    %c0_i32 = arith.constant 0 : i32
    %c0_i32_0 = arith.constant 0 : i32
    return %arg0, %c0_i32 : i32, i32
  }
  func.func @transform_4(%arg0: i32, %arg1: memref<1xi32, #tpu.memory_space<smem>>) -> (i32, i32) {
    %c0_i32 = arith.constant 0 : i32
    %c0_i32_0 = arith.constant 0 : i32
    return %arg0, %c0_i32 : i32, i32
  }
  func.func @transform_5(%arg0: i32, %arg1: memref<1xi32, #tpu.memory_space<smem>>) -> (i32, i32) {
    %c0_i32 = arith.constant 0 : i32
    %c0_i32_0 = arith.constant 0 : i32
    return %arg0, %c0_i32 : i32, i32
  }
  func.func @transform_6(%arg0: i32, %arg1: memref<1xi32, #tpu.memory_space<smem>>) -> (i32, i32) {
    %c0_i32 = arith.constant 0 : i32
    %c0_i32_0 = arith.constant 0 : i32
    return %arg0, %c0_i32 : i32, i32
  }
  func.func @transform_7(%arg0: i32, %arg1: memref<1xi32, #tpu.memory_space<smem>>) -> (i32, i32) {
    %c0_i32 = arith.constant 0 : i32
    %c0_i32_0 = arith.constant 0 : i32
    return %arg0, %c0_i32 : i32, i32
  }
}

</mosaic_0001>

<llo_original>
// kernel: tpu_custom_call.1
$region0: #{tpu_custom_call.1}
  #allocation0 [shape = 'u32[]', space=smem, size = 0x4, offset = 0x4, fixed_abs, tag = 'smem constant byte address 0x4 - core index']
  #allocation1 [shape = 'u32[72,128]{1,0:T(1,128)}', space=vmem, size = 0x9000, scoped, tag = 'internal scratch']
  #allocation2 [shape = 's32[1]{0}', space=sflag, size = 0x4, scoped, tag = 'scoped memory for tpu_custom_call.1']
  #allocation3 [shape = 's32[1]{0:T(128)S(6)}', space=smem, size = 0x200, scoped, tag = 'prefetched SMEM operand 0']
  %s0 = inlined_call_operand.<no memory space> [shape: s32[1], index: 0, kind: input, shape index: {}]
  %s1 = inlined_call_operand.hbm [shape: f32[8,128], index: 1, kind: input, shape index: {}]
  %s2 = inlined_call_operand.hbm [shape: f32[8,128], index: 2, kind: input, shape index: {}]
  %s3 = inlined_call_operand.hbm [shape: f32[8,128], index: 3, kind: input, shape index: {}]
  %s4 = inlined_call_operand.hbm [shape: f32[8,128], index: 4, kind: input, shape index: {}]
  %s5 = inlined_call_operand.hbm [shape: f32[8,128], index: 5, kind: output, shape index: {0}]
  %s6 = inlined_call_operand.hbm [shape: f32[8,128], index: 6, kind: output, shape index: {1}]
  %s7 = inlined_call_operand.hbm [shape: f32[8,128], index: 7, kind: output, shape index: {2}]
  %s8 = inlined_call_operand.hbm [shape: f32[8,128], index: 8, kind: output, shape index: {3}]
  %9 = xla_tuple %s5, %s6, %s7, %s8
  %s10 = sld [smem:[#allocation0]]
  $region66: #{tpu_custom_call.1} parent=0
    _
  %s12 = ssub.s32 1, %s10
  %s13 = scalar_select 0, %s12, %s10
  %14 = sst [smem:[#allocation3]] %s0
  $region1: #{tpu_custom_call.1} parent=0
    #allocation4 [shape = 'u8[4096]{0}', space=vmem, size = 0x1000, scoped, tag = 'input window, operand 1, single buffered']
    #allocation5 [shape = 's32[1]{0}', space=sflag, size = 0x4, scoped, tag = 'scoped memory for tpu_custom_call.1']
    #allocation6 [shape = 's32[1]{0}', space=sflag, size = 0x4, scoped, tag = 'scoped memory for tpu_custom_call.1']
    #allocation7 [shape = 'u8[4096]{0}', space=vmem, size = 0x1000, scoped, tag = 'input window, operand 2, single buffered']
    #allocation8 [shape = 's32[1]{0}', space=sflag, size = 0x4, scoped, tag = 'scoped memory for tpu_custom_call.1']
    #allocation9 [shape = 'u8[4096]{0}', space=vmem, size = 0x1000, scoped, tag = 'input window, operand 3, single buffered']
    #allocation10 [shape = 'u8[4096]{0}', space=vmem, size = 0x1000, scoped, tag = 'input window, operand 4, single buffered']
    #allocation11 [shape = 's32[1]{0}', space=sflag, size = 0x4, scoped, tag = 'scoped memory for tpu_custom_call.1']
    #allocation12 [shape = 'u8[4096]{0}', space=vmem, size = 0x1000, scoped, tag = 'output window, operand 0, single buffered']
    #allocation13 [shape = 'u8[4096]{0}', space=vmem, size = 0x1000, scoped, tag = 'output window, operand 1, single buffered']
    #allocation14 [shape = 's32[1]{0}', space=sflag, size = 0x4, scoped, tag = 'scoped memory for tpu_custom_call.1']
    #allocation15 [shape = 'u8[4096]{0}', space=vmem, size = 0x1000, scoped, tag = 'output window, operand 2, single buffered']
    #allocation16 [shape = 'u8[4096]{0}', space=vmem, size = 0x1000, scoped, tag = 'output window, operand 3, single buffered']
    #allocation17 [shape = 's32[1]{0}', space=sflag, size = 0x4, scoped, tag = 'scoped memory for tpu_custom_call.1']
    %15 = vsyncpa [#allocation5], 0
    %16 = vsyncpa [#allocation8], 0
    %17 = vsyncpa [#allocation11], 0
    %18 = vsyncpa [#allocation6], 0
    %19 = vsyncpa [#allocation14], 0
    %20 = vsyncpa [#allocation17], 0
    // Predicated region
    $region2: #{tpu_custom_call.1} parent=1 // pred_check
      _
    $region3: #{tpu_custom_call.1} parent=1 // pred_check_branch
      %22 = sbr.rel (0) target = $region5
    $region4: #{tpu_custom_call.1} parent=1 // pred_region
      %24 = vsyncadd [#allocation5], 0
      %s26 = sshll.u32 %s1, 4
      %s27 = int_to_ptr.hbm [resolvable:$true] %s26
      %s28 = sshll.u32 [#allocation4], 4
      %s29 = int_to_ptr.vmem [resolvable:$true] %s28
      %31 = dma.hbm_to_vmem [thread:$0]  %s27, 128, %s29, [#allocation5]
    $region5: #{tpu_custom_call.1} parent=1 // pred_fallthru
      _
    // Predicated region
    $region6: #{tpu_custom_call.1} parent=1 // pred_check
      _
    $region7: #{tpu_custom_call.1} parent=1 // pred_check_branch
      %33 = sbr.rel (0) target = $region9
    $region8: #{tpu_custom_call.1} parent=1 // pred_region
      %35 = vsyncadd [#allocation8], 0
      %s37 = sshll.u32 %s2, 4
      %s38 = int_to_ptr.hbm [resolvable:$true] %s37
      %s39 = sshll.u32 [#allocation7], 4
      %s40 = int_to_ptr.vmem [resolvable:$true] %s39
      %42 = dma.hbm_to_vmem [thread:$0]  %s38, 128, %s40, [#allocation8]
    $region9: #{tpu_custom_call.1} parent=1 // pred_fallthru
      _
    // Predicated region
    $region10: #{tpu_custom_call.1} parent=1 // pred_check
      _
    $region11: #{tpu_custom_call.1} parent=1 // pred_check_branch
      %44 = sbr.rel (0) target = $region13
    $region12: #{tpu_custom_call.1} parent=1 // pred_region
      %46 = vsyncadd [#allocation8], 0
      %s48 = sshll.u32 %s3, 4
      %s49 = int_to_ptr.hbm [resolvable:$true] %s48
      %s50 = sshll.u32 [#allocation9], 4
      %s51 = int_to_ptr.vmem [resolvable:$true] %s50
      %53 = dma.hbm_to_vmem [thread:$0]  %s49, 128, %s51, [#allocation8]
    $region13: #{tpu_custom_call.1} parent=1 // pred_fallthru
      _
    // Predicated region
    $region14: #{tpu_custom_call.1} parent=1 // pred_check
      _
    $region15: #{tpu_custom_call.1} parent=1 // pred_check_branch
      %55 = sbr.rel (0) target = $region17
    $region16: #{tpu_custom_call.1} parent=1 // pred_region
      %57 = vsyncadd [#allocation11], 0
      %s59 = sshll.u32 %s4, 4
      %s60 = int_to_ptr.hbm [resolvable:$true] %s59
      %s61 = sshll.u32 [#allocation10], 4
      %s62 = int_to_ptr.vmem [resolvable:$true] %s61
      %64 = dma.hbm_to_vmem [thread:$0]  %s60, 128, %s62, [#allocation11]
    $region17: #{tpu_custom_call.1} parent=1 // pred_fallthru
      _
    // Predicated region
    $region18: #{tpu_custom_call.1} parent=1 // pred_check
      _
    $region19: #{tpu_custom_call.1} parent=1 // pred_check_branch
      %66 = sbr.rel (0) target = $region21
    $region20: #{tpu_custom_call.1} parent=1 // pred_region
      %68 = dma.done [#allocation5], 128
    $region21: #{tpu_custom_call.1} parent=1 // pred_fallthru
      _
    // Predicated region
    $region22: #{tpu_custom_call.1} parent=1 // pred_check
      _
    $region23: #{tpu_custom_call.1} parent=1 // pred_check_branch
      %70 = sbr.rel (0) target = $region25
    $region24: #{tpu_custom_call.1} parent=1 // pred_region
      %72 = dma.done [#allocation8], 128
    $region25: #{tpu_custom_call.1} parent=1 // pred_fallthru
      _
    // Predicated region
    $region26: #{tpu_custom_call.1} parent=1 // pred_check
      _
    $region27: #{tpu_custom_call.1} parent=1 // pred_check_branch
      %74 = sbr.rel (0) target = $region29
    $region28: #{tpu_custom_call.1} parent=1 // pred_region
      %76 = dma.done [#allocation8], 128
    $region29: #{tpu_custom_call.1} parent=1 // pred_fallthru
      _
    // Predicated region
    $region30: #{tpu_custom_call.1} parent=1 // pred_check
      _
    $region31: #{tpu_custom_call.1} parent=1 // pred_check_branch
      %78 = sbr.rel (0) target = $region33
    $region32: #{tpu_custom_call.1} parent=1 // pred_region
      %80 = dma.done [#allocation11], 128
    $region33: #{tpu_custom_call.1} parent=1 // pred_fallthru
      _
    %v81 = vlaneseq
    %v82 = vshrl.u32 %v81, 7
    %v83 = vlaneseq
    %v84 = vand.u32 %v83, 127
    %s85 = smul.u32 0, 1024
    %v86 = vmul.u32 %v82, 128
    %v87 = vstv %s85
    %v88 = vadd.s32 %v87, %v86
    %v89 = vadd.s32 %v88, %v84
    %s90 = sld [smem:[#allocation3]]
    %s91 = smul.u32 %s90, 2654435769
    %v92 = vld [vmem:[#allocation4] sm:$0xff]
    %s93 = sadd.s32 %s91, 2246822507
    %v94 = vstv %s93
    %v95 = vxor.u32 %v89, %v94
    %v96 = vshrl.u32 %v95, 16
    %v97 = vxor.u32 %v95, %v96
    %v98 = vmul.u32 %v97, 2146121005
    %v99 = vshrl.u32 %v98, 15
    %v100 = vxor.u32 %v98, %v99
    %v101 = vmul.u32 %v100, 2221713035
    %v102 = vshrl.u32 %v101, 16
    %v103 = vxor.u32 %v101, %v102
    %v104 = vshrl.u32 %v103, 8
    %vm105 = vcmp.ge.s32.totalorder %v104, 8388608
    %v106 = vmul.f32 %v92, 2.0
    %v107 = vsel %vm105, %v106, 0.0
    %108 = vst [vmem:[#allocation12] sm:$0xff] %v107
    %v109 = vld [vmem:[#allocation7] sm:$0xff]
    %s110 = sadd.s32 %s91, 3266489909
    %v111 = vstv %s110
    %v112 = vxor.u32 %v89, %v111
    %v113 = vshrl.u32 %v112, 16
    %v114 = vxor.u32 %v112, %v113
    %v115 = vmul.u32 %v114, 2146121005
    %v116 = vshrl.u32 %v115, 15
    %v117 = vxor.u32 %v115, %v116
    %v118 = vmul.u32 %v117, 2221713035
    %v119 = vshrl.u32 %v118, 16
    %v120 = vxor.u32 %v118, %v119
    %v121 = vshrl.u32 %v120, 8
    %vm122 = vcmp.ge.s32.totalorder %v121, 8388608
    %v123 = vmul.f32 %v109, 2.0
    %v124 = vsel %vm122, %v123, 0.0
    %125 = vst [vmem:[#allocation13] sm:$0xff] %v124
    %v126 = vld [vmem:[#allocation9] sm:$0xff]
    %s127 = sadd.s32 %s91, 668265263
    %v128 = vstv %s127
    %v129 = vxor.u32 %v89, %v128
    %v130 = vshrl.u32 %v129, 16
    %v131 = vxor.u32 %v129, %v130
    %v132 = vmul.u32 %v131, 2146121005
    %v133 = vshrl.u32 %v132, 15
    %v134 = vxor.u32 %v132, %v133
    %v135 = vmul.u32 %v134, 2221713035
    %v136 = vshrl.u32 %v135, 16
    %v137 = vxor.u32 %v135, %v136
    %v138 = vshrl.u32 %v137, 8
    %vm139 = vcmp.ge.s32.totalorder %v138, 8388608
    %v140 = vmul.f32 %v126, 2.0
    %v141 = vsel %vm139, %v140, 0.0
    %142 = vst [vmem:[#allocation15] sm:$0xff] %v141
    %v143 = vld [vmem:[#allocation10] sm:$0xff]
    %s144 = sadd.s32 %s91, 374761393
    %v145 = vstv %s144
    %v146 = vxor.u32 %v89, %v145
    %v147 = vshrl.u32 %v146, 16
    %v148 = vxor.u32 %v146, %v147
    %v149 = vmul.u32 %v148, 2146121005
    %v150 = vshrl.u32 %v149, 15
    %v151 = vxor.u32 %v149, %v150
    %v152 = vmul.u32 %v151, 2221713035
    %v153 = vshrl.u32 %v152, 16
    %v154 = vxor.u32 %v152, %v153
    %v155 = vshrl.u32 %v154, 8
    %vm156 = vcmp.ge.s32.totalorder %v155, 8388608
    %v157 = vmul.f32 %v143, 2.0
    %v158 = vsel %vm156, %v157, 0.0
    %159 = vst [vmem:[#allocation16] sm:$0xff] %v158
    // Predicated region
    $region34: #{tpu_custom_call.1} parent=1 // pred_check
      _
    $region35: #{tpu_custom_call.1} parent=1 // pred_check_branch
      %161 = sbr.rel (0) target = $region37
    $region36: #{tpu_custom_call.1} parent=1 // pred_region
      %163 = vsyncadd [#allocation6], 0
      %s165 = sshll.u32 [#allocation12], 4
      %s166 = int_to_ptr.vmem [resolvable:$true] %s165
      %s167 = sshll.u32 %s5, 4
      %s168 = int_to_ptr.hbm [resolvable:$true] %s167
      %170 = dma.vmem_to_hbm [thread:$0]  %s166, 128, %s168, [#allocation6]
    $region37: #{tpu_custom_call.1} parent=1 // pred_fallthru
      _
    // Predicated region
    $region38: #{tpu_custom_call.1} parent=1 // pred_check
      _
    $region39: #{tpu_custom_call.1} parent=1 // pred_check_branch
      %172 = sbr.rel (0) target = $region41
    $region40: #{tpu_custom_call.1} parent=1 // pred_region
      %174 = vsyncadd [#allocation14], 0
      %s176 = sshll.u32 [#allocation13], 4
      %s177 = int_to_ptr.vmem [resolvable:$true] %s176
      %s178 = sshll.u32 %s6, 4
      %s179 = int_to_ptr.hbm [resolvable:$true] %s178
      %181 = dma.vmem_to_hbm [thread:$0]  %s177, 128, %s179, [#allocation14]
    $region41: #{tpu_custom_call.1} parent=1 // pred_fallthru
      _
    // Predicated region
    $region42: #{tpu_custom_call.1} parent=1 // pred_check
      _
    $region43: #{tpu_custom_call.1} parent=1 // pred_check_branch
      %183 = sbr.rel (0) target = $region45
    $region44: #{tpu_custom_call.1} parent=1 // pred_region
      %185 = vsyncadd [#allocation14], 0
      %s187 = sshll.u32 [#allocation15], 4
      %s188 = int_to_ptr.vmem [resolvable:$true] %s187
      %s189 = sshll.u32 %s7, 4
      %s190 = int_to_ptr.hbm [resolvable:$true] %s189
      %192 = dma.vmem_to_hbm [thread:$0]  %s188, 128, %s190, [#allocation14]
    $region45: #{tpu_custom_call.1} parent=1 // pred_fallthru
      _
    // Predicated region
    $region46: #{tpu_custom_call.1} parent=1 // pred_check
      _
    $region47: #{tpu_custom_call.1} parent=1 // pred_check_branch
      %194 = sbr.rel (0) target = $region49
    $region48: #{tpu_custom_call.1} parent=1 // pred_region
      %196 = vsyncadd [#allocation17], 0
      %s198 = sshll.u32 [#allocation16], 4
      %s199 = int_to_ptr.vmem [resolvable:$true] %s198
      %s200 = sshll.u32 %s8, 4
      %s201 = int_to_ptr.hbm [resolvable:$true] %s200
      %203 = dma.vmem_to_hbm [thread:$0]  %s199, 128, %s201, [#allocation17]
    $region49: #{tpu_custom_call.1} parent=1 // pred_fallthru
      _
    // Predicated region
    $region50: #{tpu_custom_call.1} parent=1 // pred_check
      _
    $region51: #{tpu_custom_call.1} parent=1 // pred_check_branch
      %205 = sbr.rel (0) target = $region53
    $region52: #{tpu_custom_call.1} parent=1 // pred_region
      %207 = dma.done [#allocation6], 128
    $region53: #{tpu_custom_call.1} parent=1 // pred_fallthru
      _
    // Predicated region
    $region54: #{tpu_custom_call.1} parent=1 // pred_check
      _
    $region55: #{tpu_custom_call.1} parent=1 // pred_check_branch
      %209 = sbr.rel (0) target = $region57
    $region56: #{tpu_custom_call.1} parent=1 // pred_region
      %211 = dma.done [#allocation14], 128
    $region57: #{tpu_custom_call.1} parent=1 // pred_fallthru
      _
    // Predicated region
    $region58: #{tpu_custom_call.1} parent=1 // pred_check
      _
    $region59: #{tpu_custom_call.1} parent=1 // pred_check_branch
      %213 = sbr.rel (0) target = $region61
    $region60: #{tpu_custom_call.1} parent=1 // pred_region
      %215 = dma.done [#allocation14], 128
    $region61: #{tpu_custom_call.1} parent=1 // pred_fallthru
      _
    // Predicated region
    $region62: #{tpu_custom_call.1} parent=1 // pred_check
      _
    $region63: #{tpu_custom_call.1} parent=1 // pred_check_branch
      %217 = sbr.rel (0) target = $region65
    $region64: #{tpu_custom_call.1} parent=1 // pred_region
      %219 = dma.done [#allocation17], 128
    $region65: #{tpu_custom_call.1} parent=1 // pred_fallthru
      _
    %220 = vsyncpa [#allocation5], 1
    %221 = vsyncpa [#allocation8], 1
    %222 = vsyncpa [#allocation11], 1
    %223 = vsyncpa [#allocation6], 1
    %224 = vsyncpa [#allocation14], 1
    %225 = vsyncpa [#allocation17], 1

</llo_original>
